<compile_context>
chip_gen: v7x
topology: tpu7x:2x2x1
jax: 0.10.0
libtpu: 0.0.40
codegen_flags: <defaults>
</compile_context>

<pallas_src>
import functools

import jax
import jax.numpy as jnp
from jax.experimental import pallas as pl
from jax.experimental.pallas import tpu as pltpu


def _label_smoothing_kernel(trg_ref, out_ref, *, smoothing_value, pad_token_id,
                            vocab_size, tile_b, tile_v):
    j = pl.program_id(1)
    col_base = j * tile_v

    trg = trg_ref[...]                                        # (tile_b, 1) int32

    # Local column indices; shift the targets / pad index instead of adding
    # 'j*tile_v' to every element of the iota.
    col = jax.lax.broadcasted_iota(jnp.int32, (tile_b, tile_v), 1)
    local_trg = trg - col_base                                # (tile_b, 1)
    local_pad = pad_token_id - col_base                       # scalar

    fill = jnp.float32(smoothing_value / (vocab_size - 2))
    confidence = jnp.float32(1.0 - smoothing_value)

    # scatter_(1, trg, confidence) on top of the uniform fill (single select).
    dist = jnp.where(col == local_trg, confidence, fill)
    # Zero the pad-token column and any row whose target is the pad token.
    zero_mask = jnp.logical_or(col == local_pad, trg == pad_token_id)
    out_ref[...] = jnp.where(zero_mask, jnp.float32(0.0), dist).astype(out_ref.dtype)


def _round_up(x, m):
    return ((x + m - 1) // m) * m


def label_smoothing_distribution(trg_token_ids_batch, *, smoothing_value,
                                 pad_token_id, vocab_size,
                                 tile_b=None, tile_v=None,
                                 out_dtype=jnp.float32):
    """trg_token_ids_batch: (B, 1) int; returns (B, vocab_size) out_dtype."""
    assert 0.0 <= smoothing_value <= 1.0
    assert vocab_size > 2, "vocab_size must be > 2 (fill divides by vocab_size - 2)"
    assert trg_token_ids_batch.ndim == 2 and trg_token_ids_batch.shape[1] == 1

    B = trg_token_ids_batch.shape[0]
    V = int(vocab_size)

    # Tile selection: large lane-dense output blocks, capped at 128 x 4096 f32
    # (= 2 MiB; 4 MiB double-buffered) so defaults fit v5e's 16 MiB scoped VMEM
    # as well as v6e / v7x.
    if tile_v is None:
        tile_v = min(_round_up(V, 128), 4096)
    if tile_b is None:
        tile_b = min(_round_up(B, 8), 128)
    assert tile_v % 128 == 0 and tile_b % 8 == 0

    B_pad = _round_up(B, tile_b)
    V_pad = _round_up(V, tile_v)

    trg = trg_token_ids_batch.astype(jnp.int32)
    if B_pad != B:
        # Padded rows use pad_token_id -> they come out all-zero and are sliced off.
        trg = jnp.pad(trg, ((0, B_pad - B), (0, 0)), constant_values=pad_token_id)

    kernel = functools.partial(
        _label_smoothing_kernel,
        smoothing_value=float(smoothing_value),
        pad_token_id=int(pad_token_id),
        vocab_size=V,
        tile_b=tile_b,
        tile_v=tile_v,
    )

    grid = (B_pad // tile_b, V_pad // tile_v)
    out = pl.pallas_call(
        kernel,
        out_shape=jax.ShapeDtypeStruct((B_pad, V_pad), out_dtype),
        grid_spec=pltpu.PrefetchScalarGridSpec(
            num_scalar_prefetch=0,
            grid=grid,
            # trg block index (i, 0) is constant across the inner vocab axis,
            # so its tiny DMA is issued once per batch block, not per vocab tile.
            in_specs=[pl.BlockSpec((tile_b, 1), lambda i, j: (i, 0))],
            out_specs=pl.BlockSpec((tile_b, tile_v), lambda i, j: (i, j)),
        ),
        compiler_params=pltpu.CompilerParams(
            dimension_semantics=("parallel", "parallel")),
    )(trg)

    if B_pad != B or V_pad != V:
        out = out[:B, :V]
    return out


def _reference(trg, smoothing_value, pad_token_id, vocab_size):
    B = trg.shape[0]
    fill = smoothing_value / (vocab_size - 2)
    out = jnp.full((B, vocab_size), fill, dtype=jnp.float32)
    out = out.at[jnp.arange(B), trg[:, 0]].set(1.0 - smoothing_value)
    out = out.at[:, pad_token_id].set(0.0)
    out = jnp.where(trg == pad_token_id, 0.0, out)
    return out


if __name__ == "__main__":
    key = jax.random.PRNGKey(0)

    smoothing_value = 0.1
    pad_token_id = 0

    # Case 1: small, nicely divisible shapes.
    vocab_size = 256
    batch_size = 8
    trg = jax.random.randint(key, (batch_size, 1), 1, vocab_size, dtype=jnp.int32)
    trg = trg.at[3, 0].set(pad_token_id)   # exercise the masked_fill_ path

    out = label_smoothing_distribution(
        trg, smoothing_value=smoothing_value,
        pad_token_id=pad_token_id, vocab_size=vocab_size)
    out = jax.block_until_ready(out)
    ref = _reference(trg, smoothing_value, pad_token_id, vocab_size)
    assert out.shape == (batch_size, vocab_size)
    assert jnp.allclose(out, ref, atol=1e-6), "mismatch vs reference (case 1)"

    # Case 2: non-divisible batch / vocab to exercise the padding path.
    key2 = jax.random.PRNGKey(1)
    vocab_size2 = 515
    batch_size2 = 10
    trg2 = jax.random.randint(key2, (batch_size2, 1), 1, vocab_size2, dtype=jnp.int32)
    trg2 = trg2.at[0, 0].set(pad_token_id)

    out2 = label_smoothing_distribution(
        trg2, smoothing_value=smoothing_value,
        pad_token_id=pad_token_id, vocab_size=vocab_size2)
    out2 = jax.block_until_ready(out2)
    ref2 = _reference(trg2, smoothing_value, pad_token_id, vocab_size2)
    assert out2.shape == (batch_size2, vocab_size2)
    assert jnp.allclose(out2, ref2, atol=1e-6), "mismatch vs reference (case 2)"

    print("KERNEL_OK")
</pallas_src>

<mosaic_0001>
module attributes {stable_mosaic.version = 11 : i64} {
  func.func @_label_smoothing_kernel(%arg0: i32, %arg1: i32, %arg2: memref<8x1xi32, #tpu.memory_space<vmem>>, %arg3: memref<8x256xf32, #tpu.memory_space<vmem>>) attributes {dimension_semantics = [#tpu.dimension_semantics<parallel>, #tpu.dimension_semantics<parallel>], iteration_bounds = array<i64: 1, 1>, scalar_prefetch = 0 : i64, scratch_operands = 0 : i64, tpu.core_type = #tpu.core_type<tc>, window_params = [{transform_indices = @transform_0, window_bounds = array<i64: 8, 1>}, {transform_indices = @transform_1, window_bounds = array<i64: 8, 256>}]} {
    %c256_i32 = arith.constant 256 : i32
    %0 = arith.muli %arg1, %c256_i32 : i32
    %c0 = arith.constant 0 : index
    %c0_0 = arith.constant 0 : index
    %1 = vector.load %arg2[%c0, %c0_0] : memref<8x1xi32, #tpu.memory_space<vmem>>, vector<8x1xi32>
    %2 = tpu.iota {dimensions = array<i32: 1>} : vector<8x256xi32>
    %3 = vector.broadcast %0 : i32 to vector<8x1xi32>
    %4 = arith.subi %1, %3 : vector<8x1xi32>
    %c0_i32 = arith.constant 0 : i32
    %5 = arith.subi %c0_i32, %0 : i32
    %6 = vector.broadcast %4 : vector<8x1xi32> to vector<8x256xi32>
    %7 = arith.cmpi eq, %2, %6 : vector<8x256xi32>
    %cst = arith.constant 0.899999976 : f32
    %cst_1 = arith.constant 3.93700786E-4 : f32
    %8 = vector.broadcast %cst : f32 to vector<8x256xf32>
    %9 = vector.broadcast %cst_1 : f32 to vector<8x256xf32>
    %10 = arith.select %7, %8, %9 : vector<8x256xi1>, vector<8x256xf32>
    %11 = vector.broadcast %5 : i32 to vector<8x256xi32>
    %12 = arith.cmpi eq, %2, %11 : vector<8x256xi32>
    %c0_i32_2 = arith.constant 0 : i32
    %13 = vector.broadcast %c0_i32_2 : i32 to vector<8x1xi32>
    %14 = arith.cmpi eq, %1, %13 : vector<8x1xi32>
    %15 = vector.broadcast %14 : vector<8x1xi1> to vector<8x256xi1>
    %16 = arith.ori %12, %15 : vector<8x256xi1>
    %cst_3 = arith.constant 0.000000e+00 : f32
    %17 = vector.broadcast %cst_3 : f32 to vector<8x256xf32>
    %18 = arith.select %16, %17, %10 : vector<8x256xi1>, vector<8x256xf32>
    %c0_4 = arith.constant 0 : index
    %c0_5 = arith.constant 0 : index
    %19 = vector.load %arg3[%c0_4, %c0_5] : memref<8x256xf32, #tpu.memory_space<vmem>>, vector<8x256xf32>
    tpu.vector_store %arg3[%c0_4, %c0_5], %18 {strides = array<i32>} : memref<8x256xf32, #tpu.memory_space<vmem>>, vector<8x256xf32>,
    return
  }
  func.func @transform_0(%arg0: i32, %arg1: i32) -> (i32, i32) {
    %c0_i32 = arith.constant 0 : i32
    %c0_i32_0 = arith.constant 0 : i32
    return %arg0, %c0_i32 : i32, i32
  }
  func.func @transform_1(%arg0: i32, %arg1: i32) -> (i32, i32) {
    %c0_i32 = arith.constant 0 : i32
    return %arg0, %arg1 : i32, i32
  }
}

</mosaic_0001>

<llo_original>
// kernel: tpu_custom_call.1
$region0: #{tpu_custom_call.1}
  #allocation0 [shape = 'u32[]', space=smem, size = 0x4, offset = 0x4, fixed_abs, tag = 'smem constant byte address 0x4 - core index']
  #allocation1 [shape = 'u32[144,128]{1,0:T(1,128)}', space=vmem, size = 0x12000, scoped, tag = 'internal scratch']
  %s0 = inlined_call_operand.vmem [shape: s32[8,1], index: 0, kind: input, shape index: {}]
  %s1 = inlined_call_operand.hbm [shape: f32[8,256], index: 1, kind: output, shape index: {}]
  %s2 = sld [smem:[#allocation0]]
  $region14: #{tpu_custom_call.1} parent=0
    _
  %s4 = ssub.s32 1, %s2
  %s5 = scalar_select 0, %s4, %s2
  $region1: #{tpu_custom_call.1} parent=0
    #allocation2 [shape = 'u8[8192]{0}', space=vmem, size = 0x2000, scoped, tag = 'output window, operand 0, single buffered']
    #allocation3 [shape = 's32[1]{0}', space=sflag, size = 0x4, scoped, tag = 'scoped memory for tpu_custom_call.1']
    %6 = vsyncpa [#allocation3], 0
    // Predicated region
    $region2: #{tpu_custom_call.1} parent=1 // pred_check
      _
    $region3: #{tpu_custom_call.1} parent=1 // pred_check_branch
      %8 = sbr.rel (0) target = $region5
    $region4: #{tpu_custom_call.1} parent=1 // pred_region
      _
    $region5: #{tpu_custom_call.1} parent=1 // pred_fallthru
      _
    %s9 = smul.u32 0, 256
    %v10 = vld [vmem:[%s0] sm:$0xff]
    %v11 = vlaneseq
    %v12 = vand.u32 %v11, 127
    %v13 = vadd.s32 %v12, 128
    %v14 = vstv %s9
    %v15 = vsub.s32 %v10, %v14
    %s16 = ssub.s32 0, %s9
    %17 = vset.pattern.permute.xlu0 0
    %18 = vperm.xlu0 %17, %v15
    %v19 = vpop.permute.xlu0 %18
    %vm20 = vcmp.eq.s32.totalorder %v12, %v19
    %vm21 = vcmp.eq.s32.totalorder %v13, %v19
    %v22 = vsel %vm20, 0.9, 0.0003937008
    %v23 = vsel %vm21, 0.9, 0.0003937008
    %v24 = vstv %s16
    %vm25 = vcmp.eq.s32.totalorder %v12, %v24
    %vm26 = vcmp.eq.s32.totalorder %v13, %v24
    %vm27 = vcmp.eq.s32.totalorder %v10, 0
    %v28 = vsel %vm27, 1, 0
    %29 = vset.pattern.permute.xlu0 0
    %30 = vperm.xlu0 %29, %v28
    %v31 = vpop.permute.xlu0 %30
    %vm32 = vcmp.eq.s32.totalorder %v31, 1
    %vm33 = vmor %vm25, %vm32
    %vm34 = vmor %vm26, %vm32
    %v35 = vsel %vm33, 0.0, %v22
    %v36 = vsel %vm34, 0.0, %v23
    %37 = vst [vmem:[#allocation2] sm:$0xff] %v35
    %38 = vst [vmem:[#allocation2 + $0x8] sm:$0xff] %v36
    // Predicated region
    $region6: #{tpu_custom_call.1} parent=1 // pred_check
      _
    $region7: #{tpu_custom_call.1} parent=1 // pred_check_branch
      %40 = sbr.rel (0) target = $region9
    $region8: #{tpu_custom_call.1} parent=1 // pred_region
      %s42 = ssub.s32 256, 256
      %43 = vsyncadd [#allocation3], %s42
      %s45 = sshll.u32 [#allocation2], 4
      %s46 = int_to_ptr.vmem [resolvable:$true] %s45
      %48 = dma.vmem_to_hbm [thread:$0]  %s46, 256, %s1, [#allocation3]
    $region9: #{tpu_custom_call.1} parent=1 // pred_fallthru
      _
    // Predicated region
    $region10: #{tpu_custom_call.1} parent=1 // pred_check
      _
    $region11: #{tpu_custom_call.1} parent=1 // pred_check_branch
      %50 = sbr.rel (0) target = $region13
    $region12: #{tpu_custom_call.1} parent=1 // pred_region
      %51 = dma.done [#allocation3], 256
    $region13: #{tpu_custom_call.1} parent=1 // pred_fallthru
      _
    %52 = vsyncpa [#allocation3], 1

</llo_original>
